<compile_context>
chip_gen: v7x
topology: tpu7x:2x2x1
jax: 0.10.0
libtpu: 0.0.40
codegen_flags: <defaults>
</compile_context>

<pallas_src>
import jax
import jax.numpy as jnp
from jax.experimental import pallas as pl
from jax.experimental.pallas import tpu as pltpu

IN_F = 3     # fc1 in_features
HID_F = 4    # fc1 out_features / fc2 in_features
OUT_F = 2    # fc2 out_features
LANES = 128  # lane width; batch is padded to a multiple of this


def fused_mlp_kernel(wb_ref, xT_ref, oT_ref):
    """oT[j, :] = sum_k W[k, j] * xT[k, :] + b[j]   (pure VPU, f32).

    wb_ref: SMEM f32[IN_F*OUT_F + OUT_F]  -- row-major W (3x2) then b (2)
    xT_ref: VMEM f32[IN_F, N_pad]         -- batch on lanes (lane-dense loads)
    oT_ref: VMEM f32[OUT_F, N_pad]        -- batch on lanes (lane-dense stores)
    """
    n_lanes = xT_ref.shape[1]
    rows = []
    for j in range(OUT_F):                       # unrolled at trace time (2)
        acc = jnp.full((1, n_lanes), wb_ref[IN_F * OUT_F + j], jnp.float32)
        for k in range(IN_F):                    # unrolled at trace time (3)
            acc = acc + wb_ref[k * OUT_F + j] * xT_ref[k:k + 1, :]
        rows.append(acc)
    oT_ref[...] = jnp.concatenate(rows, axis=0).astype(oT_ref.dtype)


def fuse_params(w1, b1, w2, b2):
    """Exact algebraic fusion of the two Linear layers (no activation between).

    Returns flat f32[IN_F*OUT_F + OUT_F] = [W.ravel(), b.ravel()] with
    W = w1 @ w2 and b = b1 @ w2 + b2. Computed once (hoisted out of the
    per-inference path since the weights are static).
    """
    w = w1 @ w2                  # (IN_F, OUT_F)
    b = b1 @ w2 + b2             # (1, OUT_F)
    return jnp.concatenate([w.reshape(-1), b.reshape(-1)]).astype(jnp.float32)


@jax.jit
def mlp_forward(x, wb):
    """Equivalent of fc2(fc1(x)) for fc1=Linear(3,4), fc2=Linear(4,2)."""
    n = x.shape[0]
    n_pad = ((n + LANES - 1) // LANES) * LANES

    # Batch-on-lanes: transpose so the batch sits on the 128-wide lane axis,
    # padded to a full multiple of 128 for unmasked, aligned vector ops.
    xT = jnp.pad(x.T, ((0, 0), (0, n_pad - n)))          # (IN_F, n_pad)

    oT = pl.pallas_call(
        fused_mlp_kernel,
        out_shape=jax.ShapeDtypeStruct((OUT_F, n_pad), x.dtype),
        in_specs=[
            pl.BlockSpec(memory_space=pltpu.MemorySpace.SMEM),  # 8 wb scalars
            pl.BlockSpec(memory_space=pltpu.MemorySpace.VMEM),  # x^T (lane-dense)
        ],
        out_specs=pl.BlockSpec(memory_space=pltpu.MemorySpace.VMEM),
    )(wb, xT)

    # Padded columns hold the bias value; they are sliced off here and must
    # not be reduced over upstream of this slice.
    return oT[:, :n].T                                     # (n, OUT_F)


def init_linear(key, in_features, out_features, dtype=jnp.float32):
    """Deterministic init mimicking PyTorch nn.Linear default U[-1/sqrt(fan_in), +]."""
    kw, kb = jax.random.split(key)
    bound = 1.0 / (in_features ** 0.5)
    # stored as (in, out) so forward is x @ W + b (== torch's x @ W.T + b)
    w = jax.random.uniform(kw, (in_features, out_features), dtype, -bound, bound)
    b = jax.random.uniform(kb, (1, out_features), dtype, -bound, bound)
    return w, b


if __name__ == "__main__":
    key = jax.random.PRNGKey(0)
    kx, k1, k2 = jax.random.split(key, 3)

    # Input matching the module's spec: x = torch.randn((10, 3))
    x = jax.random.normal(kx, (10, IN_F), dtype=jnp.float32)

    w1, b1 = init_linear(k1, IN_F, HID_F)    # fc1: Linear(3, 4)
    w2, b2 = init_linear(k2, HID_F, OUT_F)   # fc2: Linear(4, 2)

    wb = jax.block_until_ready(fuse_params(w1, b1, w2, b2))  # hoisted, once

    out = mlp_forward(x, wb)
    out = jax.block_until_ready(out)

    # Reference: original unfused two-layer math in plain JAX.
    ref = (x @ w1 + b1) @ w2 + b2
    assert out.shape == (10, OUT_F)
    assert jnp.allclose(out, ref, atol=1e-5, rtol=1e-5)

    print("KERNEL_OK")
</pallas_src>

<mosaic_0001>
module attributes {stable_mosaic.version = 11 : i64} {
  func.func @fused_mlp_kernel(%arg0: memref<8xf32, #tpu.memory_space<smem>>, %arg1: memref<3x128xf32, #tpu.memory_space<vmem>>, %arg2: memref<2x128xf32, #tpu.memory_space<vmem>>) attributes {dimension_semantics = [], scalar_prefetch = 0 : i64, scratch_operands = 0 : i64, tpu.core_type = #tpu.core_type<tc>} {
    %c6 = arith.constant 6 : index
    %0 = memref.load %arg0[%c6] : memref<8xf32, #tpu.memory_space<smem>>
    %1 = vector.broadcast %0 : f32 to vector<1x128xf32>
    %c0 = arith.constant 0 : index
    %2 = memref.load %arg0[%c0] : memref<8xf32, #tpu.memory_space<smem>>
    %c0_0 = arith.constant 0 : index
    %c0_1 = arith.constant 0 : index
    %3 = vector.load %arg1[%c0_0, %c0_1] : memref<3x128xf32, #tpu.memory_space<vmem>>, vector<1x128xf32>
    %4 = vector.broadcast %2 : f32 to vector<1x128xf32>
    %5 = arith.mulf %4, %3 : vector<1x128xf32>
    %6 = arith.addf %1, %5 : vector<1x128xf32>
    %c2 = arith.constant 2 : index
    %7 = memref.load %arg0[%c2] : memref<8xf32, #tpu.memory_space<smem>>
    %c1 = arith.constant 1 : index
    %c0_2 = arith.constant 0 : index
    %8 = vector.load %arg1[%c1, %c0_2] : memref<3x128xf32, #tpu.memory_space<vmem>>, vector<1x128xf32>
    %9 = vector.broadcast %7 : f32 to vector<1x128xf32>
    %10 = arith.mulf %9, %8 : vector<1x128xf32>
    %11 = arith.addf %6, %10 : vector<1x128xf32>
    %c4 = arith.constant 4 : index
    %12 = memref.load %arg0[%c4] : memref<8xf32, #tpu.memory_space<smem>>
    %c2_3 = arith.constant 2 : index
    %c0_4 = arith.constant 0 : index
    %13 = vector.load %arg1[%c2_3, %c0_4] : memref<3x128xf32, #tpu.memory_space<vmem>>, vector<1x128xf32>
    %14 = vector.broadcast %12 : f32 to vector<1x128xf32>
    %15 = arith.mulf %14, %13 : vector<1x128xf32>
    %16 = arith.addf %11, %15 : vector<1x128xf32>
    %c7 = arith.constant 7 : index
    %17 = memref.load %arg0[%c7] : memref<8xf32, #tpu.memory_space<smem>>
    %18 = vector.broadcast %17 : f32 to vector<1x128xf32>
    %c1_5 = arith.constant 1 : index
    %19 = memref.load %arg0[%c1_5] : memref<8xf32, #tpu.memory_space<smem>>
    %c0_6 = arith.constant 0 : index
    %c0_7 = arith.constant 0 : index
    %20 = vector.load %arg1[%c0_6, %c0_7] : memref<3x128xf32, #tpu.memory_space<vmem>>, vector<1x128xf32>
    %21 = vector.broadcast %19 : f32 to vector<1x128xf32>
    %22 = arith.mulf %21, %20 : vector<1x128xf32>
    %23 = arith.addf %18, %22 : vector<1x128xf32>
    %c3 = arith.constant 3 : index
    %24 = memref.load %arg0[%c3] : memref<8xf32, #tpu.memory_space<smem>>
    %c1_8 = arith.constant 1 : index
    %c0_9 = arith.constant 0 : index
    %25 = vector.load %arg1[%c1_8, %c0_9] : memref<3x128xf32, #tpu.memory_space<vmem>>, vector<1x128xf32>
    %26 = vector.broadcast %24 : f32 to vector<1x128xf32>
    %27 = arith.mulf %26, %25 : vector<1x128xf32>
    %28 = arith.addf %23, %27 : vector<1x128xf32>
    %c5 = arith.constant 5 : index
    %29 = memref.load %arg0[%c5] : memref<8xf32, #tpu.memory_space<smem>>
    %c2_10 = arith.constant 2 : index
    %c0_11 = arith.constant 0 : index
    %30 = vector.load %arg1[%c2_10, %c0_11] : memref<3x128xf32, #tpu.memory_space<vmem>>, vector<1x128xf32>
    %31 = vector.broadcast %29 : f32 to vector<1x128xf32>
    %32 = arith.mulf %31, %30 : vector<1x128xf32>
    %33 = arith.addf %28, %32 : vector<1x128xf32>
    %34 = tpu.concatenate %16, %33 in 0 : vector<1x128xf32>, vector<1x128xf32> -> vector<2x128xf32>
    %c0_12 = arith.constant 0 : index
    %c0_13 = arith.constant 0 : index
    %35 = vector.load %arg2[%c0_12, %c0_13] : memref<2x128xf32, #tpu.memory_space<vmem>>, vector<2x128xf32>
    tpu.vector_store %arg2[%c0_12, %c0_13], %34 {strides = array<i32>} : memref<2x128xf32, #tpu.memory_space<vmem>>, vector<2x128xf32>,
    return
  }
}

</mosaic_0001>

<llo_original>
// kernel: mlp_forward.1
$region0: #{mlp_forward.1}
  #allocation0 [shape = 'u32[]', space=smem, size = 0x4, offset = 0x4, fixed_abs, tag = 'smem constant byte address 0x4 - core index']
  #allocation1 [shape = 'u32[144,128]{1,0:T(1,128)}', space=vmem, size = 0x12000, scoped, tag = 'internal scratch']
  %s0 = inlined_call_operand.vmem [shape: f32[8], index: 0, kind: input, shape index: {}]
  %s1 = inlined_call_operand.vmem [shape: f32[3,128], index: 1, kind: input, shape index: {}]
  %s2 = inlined_call_operand.vmem [shape: f32[2,128], index: 2, kind: output, shape index: {}]
  %s3 = sld [smem:[#allocation0]]
  $region22: #{mlp_forward.1} parent=0
    _
  %s5 = ssub.s32 1, %s3
  %s6 = scalar_select 0, %s5, %s3
  $region1: #{mlp_forward.1} parent=0
    #allocation2 [shape = 'u8[512]{0}', space=smem, size = 0x200, scoped, tag = 'input window, operand 0, single buffered']
    #allocation3 [shape = 's32[1]{0}', space=sflag, size = 0x4, scoped, tag = 'scoped memory for mlp_forward.1']
    %7 = vsyncpa [#allocation3], 0
    // Predicated region
    $region2: #{mlp_forward.1} parent=1 // pred_check
      _
    $region3: #{mlp_forward.1} parent=1 // pred_check_branch
      %9 = sbr.rel (0) target = $region5
    $region4: #{mlp_forward.1} parent=1 // pred_region
      %s11 = ssub.s32 16, 16
      %12 = vsyncadd [#allocation3], %s11
      %s14 = sshll.u32 %s0, 4
      %s15 = int_to_ptr.vmem [resolvable:$true] %s14
      %17 = dma.vmem_to_smem %s15, 16, [#allocation2], [#allocation3]
    $region5: #{mlp_forward.1} parent=1 // pred_fallthru
      _
    // Predicated region
    $region6: #{mlp_forward.1} parent=1 // pred_check
      _
    $region7: #{mlp_forward.1} parent=1 // pred_check_branch
      %19 = sbr.rel (0) target = $region9
    $region8: #{mlp_forward.1} parent=1 // pred_region
      _
    $region9: #{mlp_forward.1} parent=1 // pred_fallthru
      _
    // Predicated region
    $region10: #{mlp_forward.1} parent=1 // pred_check
      _
    $region11: #{mlp_forward.1} parent=1 // pred_check_branch
      %21 = sbr.rel (0) target = $region13
    $region12: #{mlp_forward.1} parent=1 // pred_region
      %22 = dma.done [#allocation3], 16
    $region13: #{mlp_forward.1} parent=1 // pred_fallthru
      _
    %23 = sfence
    %s24 = sld [smem:[#allocation2 + $0x6]]
    %v25 = vstv %s24
    %s26 = sld [smem:[#allocation2]]
    %v27 = vld [vmem:[%s1] sm:$0x1]
    %v28 = vstv %s26
    %v29 = vmul.f32 %v28, %v27
    %v30 = vadd.f32 %v25, %v29
    %s31 = sld [smem:[#allocation2 + $0x2]]
    %v32 = vld [vmem:[%s1 + $0x1] sm:$0x1]
    %v33 = vstv %s31
    %v34 = vmul.f32 %v33, %v32
    %v35 = vadd.f32 %v30, %v34
    %s36 = sld [smem:[#allocation2 + $0x4]]
    %v37 = vld [vmem:[%s1 + $0x2] sm:$0x1]
    %v38 = vstv %s36
    %v39 = vmul.f32 %v38, %v37
    %v40 = vadd.f32 %v35, %v39
    %s41 = sld [smem:[#allocation2 + $0x7]]
    %v42 = vstv %s41
    %s43 = sld [smem:[#allocation2 + $0x1]]
    %v44 = vstv %s43
    %v45 = vmul.f32 %v44, %v27
    %v46 = vadd.f32 %v42, %v45
    %s47 = sld [smem:[#allocation2 + $0x3]]
    %v48 = vstv %s47
    %v49 = vmul.f32 %v48, %v32
    %v50 = vadd.f32 %v46, %v49
    %s51 = sld [smem:[#allocation2 + $0x5]]
    %v52 = vstv %s51
    %v53 = vmul.f32 %v52, %v37
    %v54 = vadd.f32 %v50, %v53
    %v56 = vrot.slane %v54, 7
    %vm58 = vcmask 1040384
    %v59 = vsel %vm58, %v40, %v56
    %60 = vst [vmem:[%s2] sm:$0x3] %v59
    // Predicated region
    $region14: #{mlp_forward.1} parent=1 // pred_check
      _
    $region15: #{mlp_forward.1} parent=1 // pred_check_branch
      %62 = sbr.rel (0) target = $region17
    $region16: #{mlp_forward.1} parent=1 // pred_region
      _
    $region17: #{mlp_forward.1} parent=1 // pred_fallthru
      _
    // Predicated region
    $region18: #{mlp_forward.1} parent=1 // pred_check
      _
    $region19: #{mlp_forward.1} parent=1 // pred_check_branch
      %64 = sbr.rel (0) target = $region21
    $region20: #{mlp_forward.1} parent=1 // pred_region
      _
    $region21: #{mlp_forward.1} parent=1 // pred_fallthru
      _
    %65 = vsyncpa [#allocation3], 1

</llo_original>
